<compile_context>
chip_gen: v5e
topology: v5e:2x2
jax: 0.10.0
libtpu: 0.0.40
codegen_flags: <defaults>
</compile_context>

<pallas_src>
import functools
import numpy as np
import jax
import jax.numpy as jnp
from jax.experimental import pallas as pl
from jax.experimental.pallas import tpu as pltpu


# ----------------------------------------------------------------------------
# Fused LightConv kernel: 1x1 conv (+folded BN1) -> depthwise kxk conv
# (+folded BN2) + ReLU.  Channels in sublanes, flattened H*W in lanes.
# ----------------------------------------------------------------------------
def _lightconv_kernel(x_ref, w1_ref, b1_ref, wdw_ref, b2_ref, mask_ref,
                      out_ref, pad_scr, *, W, K, HW, M_pad, CH):
    Ct = pad_scr.shape[0]                      # channel tile
    P = K // 2

    # ---- conv1: 1x1 pointwise conv as ONE bf16 MXU contraction (f32 acc) ----
    # BN1 scale is folded into w1 on the host; cast x to bf16 in VMEM (cheap VPU op).
    x_bf = x_ref[0].astype(jnp.bfloat16)                       # (C1, HW)
    y = jnp.dot(w1_ref[...], x_bf, preferred_element_type=jnp.float32)
    y = y + b1_ref[...]                                        # folded BN1 bias

    # ---- zero-haloed flat scratch, lane-aligned halo of width M_pad >= M ----
    if M_pad > 0:
        zero_border = jnp.zeros((Ct, M_pad), jnp.float32)
        pad_scr[:, :M_pad] = zero_border
        pad_scr[:, M_pad + HW:] = zero_border
    pad_scr[:, M_pad:M_pad + HW] = y                           # aligned interior store

    # ---- conv2: depthwise KxK 'same' conv via static lane-offset taps -------
    # Column-factored masks: the zero halo already covers row-out-of-range for
    # dx == 0; for dx != 0 every row-out-of-range read that wraps into real data
    # is also column-out-of-range, so one column mask per dx suffices.
    for c0 in range(0, HW, CH):                # chunk HW so acc is finished per chunk
        acc = None
        for kx in range(K):
            dx = kx - P
            col = None
            for ky in range(K):
                kk = ky * K + kx
                off = (ky - P) * W + dx
                start = M_pad + c0 + off                       # static, >= 0
                tap = pad_scr[:, start:start + CH]             # (Ct, CH)
                term = tap * wdw_ref[:, kk:kk + 1]             # folded BN2 scale in wdw
                col = term if col is None else col + term
            if dx != 0:
                col = col * mask_ref[kx, :, c0:c0 + CH]        # (1, CH) column mask
            acc = col if acc is None else acc + col
        z = acc + b2_ref[...]                                  # folded BN2 bias
        out_ref[0, :, c0:c0 + CH] = jnp.maximum(z, 0.0).astype(out_ref.dtype)  # ReLU


# ----------------------------------------------------------------------------
# Wrapper: tiling / budget logic + pallas_call
# ----------------------------------------------------------------------------
def _round_up(x, m):
    return (x + m - 1) // m * m


def _vmem_budget_bytes():
    try:
        cap = int(pltpu.get_tpu_info().vmem_capacity_bytes)
    except Exception:
        cap = 64 * 1024 * 1024          # assume the smallest per-TC VMEM (v7x)
    return max(32 * 1024 * 1024, int(cap * 0.75))


def _choose_channel_tile(C2, C1, HW, K, M_pad, B, budget):
    """Largest channel tile (multiple of 8 dividing C2, or C2 itself) that fits
    the VMEM budget; prefer >=2 total grid points when B == 1 (megacore)."""
    cands = {C2} | {d for d in range(8, C2, 8) if C2 % d == 0}
    cands = sorted(cands)

    def footprint(t):
        x_b   = 2 * C1 * HW * 4                   # f32 x block, double-buffered
        w1_b  = 2 * t * max(C1, 128) * 2          # bf16 folded 1x1 weights (lane pad)
        wdw_b = 2 * t * 128 * 4                   # (t, KK) lane-padded
        bias  = 2 * 2 * t * 128 * 4               # b1, b2 lane-padded
        msk_b = 2 * K * 8 * HW * 4                # (K,1,HW) sublane-padded
        out_b = 2 * t * HW * 4                    # f32 out block, double-buffered
        scr_b = t * (HW + 2 * M_pad) * 4          # haloed scratch
        live  = 2 * t * HW * 4                    # y + acc/col temporaries (slack)
        return x_b + w1_b + wdw_b + bias + msk_b + out_b + scr_b + live

    fitting = [t for t in cands if footprint(t) <= budget]
    tile = max(fitting) if fitting else min(cands)
    if B == 1 and C2 // tile < 2:                 # keep both v7x TCs busy at B == 1
        halves = [t for t in (fitting or cands) if C2 // t >= 2]
        if halves:
            tile = max(halves)
    # TODO(synk): row-tiled grid axis (halo blocks) / C1-reduction axis for cases
    #             where even the smallest channel tile exceeds the budget.
    return tile


def lightconv_forward(x_nchw, p, *, k=3, eps=1e-5):
    """LightConv forward. x_nchw: (B, C1, H, W) f32 -> (B, C2, H, W) f32."""
    B, C1, H, W = x_nchw.shape
    C2 = p["conv1_w"].shape[0]
    HW = H * W
    K = k
    KK = K * K
    P = K // 2
    M = P * W + P                               # flat halo needed by all K*K taps
    M_pad = _round_up(M, 128) if M > 0 else 0   # lane-aligned halo width

    budget = _vmem_budget_bytes()
    tC2 = _choose_channel_tile(C2, C1, HW, K, M_pad, B, budget)

    # HW chunk kept "hot" through the whole tap loop before its output is stored.
    CH = HW
    for cand in (1024, 512, 256, 128):
        if HW % cand == 0:
            CH = cand
            break

    # Fold BatchNorm (inference / running stats): scales into the weights (f32,
    # before any bf16 cast), biases stay as per-channel adds.
    s1 = p["bn1_gamma"] / jnp.sqrt(p["bn1_var"] + eps)
    b1 = p["bn1_beta"] - p["bn1_mean"] * s1
    s2 = p["bn2_gamma"] / jnp.sqrt(p["bn2_var"] + eps)
    b2 = p["bn2_beta"] - p["bn2_mean"] * s2

    w1 = (p["conv1_w"][:, :, 0, 0] * s1[:, None]).astype(jnp.bfloat16)   # (C2, C1)
    wdw = p["conv2_w"][:, 0].reshape(C2, KK) * s2[:, None]               # (C2, KK) f32

    # No wrapper dtype cast: kernel reads f32 and casts on the VPU.
    x_flat = x_nchw.reshape(B, C1, HW)

    # K column-validity masks for 'same' zero padding (only dx != 0 are used).
    masks = np.zeros((K, 1, HW), np.float32)
    for kx in range(K):
        dx = kx - P
        m = np.zeros((H, W), np.float32)
        m[:, max(0, -dx):min(W, W - dx)] = 1.0
        masks[kx, 0] = m.reshape(-1)
    masks = jnp.asarray(masks)

    grid = (B, C2 // tC2)
    kern = functools.partial(_lightconv_kernel, W=W, K=K, HW=HW, M_pad=M_pad, CH=CH)

    out = pl.pallas_call(
        kern,
        out_shape=jax.ShapeDtypeStruct((B, C2, HW), jnp.float32),
        grid=grid,
        in_specs=[
            pl.BlockSpec((1, C1, HW), lambda b, c: (b, 0, 0)),     # x (f32)
            pl.BlockSpec((tC2, C1), lambda b, c: (c, 0)),          # folded 1x1 weights
            pl.BlockSpec((tC2, 1), lambda b, c: (c, 0)),           # BN1 bias
            pl.BlockSpec((tC2, KK), lambda b, c: (c, 0)),          # folded dw weights
            pl.BlockSpec((tC2, 1), lambda b, c: (c, 0)),           # BN2 bias
            pl.BlockSpec((K, 1, HW), lambda b, c: (0, 0, 0)),      # column masks
        ],
        out_specs=pl.BlockSpec((1, tC2, HW), lambda b, c: (b, c, 0)),
        scratch_shapes=[pltpu.VMEM((tC2, HW + 2 * M_pad), jnp.float32)],
        compiler_params=pltpu.CompilerParams(
            dimension_semantics=("parallel", "parallel"),
            vmem_limit_bytes=budget),
    )(x_flat, w1, b1[:, None], wdw, b2[:, None], masks)

    return out.reshape(B, C2, H, W)


# ----------------------------------------------------------------------------
# Parameter init (deterministic, PyTorch module shapes, eval-mode BN stats)
# ----------------------------------------------------------------------------
def init_params(key, c1, c2, k):
    ks = jax.random.split(key, 10)
    p = {}
    p["conv1_w"] = 0.2 * jax.random.normal(ks[0], (c2, c1, 1, 1), jnp.float32)
    p["bn1_gamma"] = 1.0 + 0.1 * jax.random.normal(ks[1], (c2,), jnp.float32)
    p["bn1_beta"] = 0.1 * jax.random.normal(ks[2], (c2,), jnp.float32)
    p["bn1_mean"] = 0.1 * jax.random.normal(ks[3], (c2,), jnp.float32)
    p["bn1_var"] = jnp.abs(1.0 + 0.1 * jax.random.normal(ks[4], (c2,), jnp.float32))
    p["conv2_w"] = 0.2 * jax.random.normal(ks[5], (c2, 1, k, k), jnp.float32)  # depthwise
    p["bn2_gamma"] = 1.0 + 0.1 * jax.random.normal(ks[6], (c2,), jnp.float32)
    p["bn2_beta"] = 0.1 * jax.random.normal(ks[7], (c2,), jnp.float32)
    p["bn2_mean"] = 0.1 * jax.random.normal(ks[8], (c2,), jnp.float32)
    p["bn2_var"] = jnp.abs(1.0 + 0.1 * jax.random.normal(ks[9], (c2,), jnp.float32))
    return p


# ----------------------------------------------------------------------------
# Pure-JAX reference (XLA convs) for a correctness check
# ----------------------------------------------------------------------------
def lightconv_ref(x, p, *, k=3, eps=1e-5):
    dn = ("NCHW", "OIHW", "NCHW")
    y = jax.lax.conv_general_dilated(x, p["conv1_w"], (1, 1), "VALID",
                                     dimension_numbers=dn)
    s1 = p["bn1_gamma"] / jnp.sqrt(p["bn1_var"] + eps)
    y = y * s1[None, :, None, None] + (p["bn1_beta"] - p["bn1_mean"] * s1)[None, :, None, None]

    C2 = y.shape[1]
    P = k // 2
    z = jax.lax.conv_general_dilated(y, p["conv2_w"], (1, 1), [(P, P), (P, P)],
                                     dimension_numbers=dn, feature_group_count=C2)
    s2 = p["bn2_gamma"] / jnp.sqrt(p["bn2_var"] + eps)
    z = z * s2[None, :, None, None] + (p["bn2_beta"] - p["bn2_mean"] * s2)[None, :, None, None]
    return jnp.maximum(z, 0.0)


if __name__ == "__main__":
    key = jax.random.PRNGKey(0)
    kx, kp = jax.random.split(key)
    B, C1, C2, H, W, K = 2, 4, 8, 16, 16, 3
    x = jax.random.normal(kx, (B, C1, H, W), jnp.float32)
    params = init_params(kp, C1, C2, K)

    out = lightconv_forward(x, params, k=K)
    jax.block_until_ready(out)
    assert out.shape == (B, C2, H, W) and out.dtype == jnp.float32

    ref = lightconv_ref(x, params, k=K)
    np.testing.assert_allclose(np.asarray(out), np.asarray(ref), rtol=5e-2, atol=2e-2)

    print("KERNEL_OK")
</pallas_src>

<mosaic_0001>
module attributes {stable_mosaic.version = 11 : i64} {
  func.func @_lightconv_kernel(%arg0: i32, %arg1: i32, %arg2: memref<1x4x256xf32, #tpu.memory_space<vmem>>, %arg3: memref<8x4xbf16, #tpu.memory_space<vmem>>, %arg4: memref<8x1xf32, #tpu.memory_space<vmem>>, %arg5: memref<8x9xf32, #tpu.memory_space<vmem>>, %arg6: memref<8x1xf32, #tpu.memory_space<vmem>>, %arg7: memref<3x1x256xf32, #tpu.memory_space<vmem>>, %arg8: memref<1x8x256xf32, #tpu.memory_space<vmem>>, %arg9: memref<8x512xf32, #tpu.memory_space<vmem>>) attributes {dimension_semantics = [#tpu.dimension_semantics<parallel>, #tpu.dimension_semantics<parallel>], iteration_bounds = array<i64: 2, 1>, scalar_prefetch = 0 : i64, scratch_operands = 1 : i64, tpu.core_type = #tpu.core_type<tc>, window_params = [{transform_indices = @transform_0, window_bounds = array<i64: 1, 4, 256>}, {transform_indices = @transform_1, window_bounds = array<i64: 8, 4>}, {transform_indices = @transform_2, window_bounds = array<i64: 8, 1>}, {transform_indices = @transform_3, window_bounds = array<i64: 8, 9>}, {transform_indices = @transform_4, window_bounds = array<i64: 8, 1>}, {pipeline_mode = #tpu.pipeline_mode<synchronous>, transform_indices = @transform_5, window_bounds = array<i64: 3, 1, 256>}, {transform_indices = @transform_6, window_bounds = array<i64: 1, 8, 256>}]} {
    %c0 = arith.constant 0 : index
    %c0_0 = arith.constant 0 : index
    %c0_1 = arith.constant 0 : index
    %0 = vector.load %arg2[%c0, %c0_0, %c0_1] : memref<1x4x256xf32, #tpu.memory_space<vmem>>, vector<1x4x256xf32>
    %1 = vector.shape_cast %0 : vector<1x4x256xf32> to vector<4x256xf32>
    %2 = arith.truncf %1 : vector<4x256xf32> to vector<4x256xbf16>
    %c0_2 = arith.constant 0 : index
    %c0_3 = arith.constant 0 : index
    %3 = vector.load %arg3[%c0_2, %c0_3] : memref<8x4xbf16, #tpu.memory_space<vmem>>, vector<8x4xbf16>
    %cst = arith.constant dense<0.000000e+00> : vector<8x256xf32>
    %4 = tpu.matmul %3, %2, %cst {dimension_numbers = #tpu.dot_dimension_numbers<[1], [0], [0], [1], [0, 0, 1, 1], [], []>} : vector<8x4xbf16>, vector<4x256xbf16>, vector<8x256xf32> -> vector<8x256xf32>
    %c0_4 = arith.constant 0 : index
    %c0_5 = arith.constant 0 : index
    %5 = vector.load %arg4[%c0_4, %c0_5] : memref<8x1xf32, #tpu.memory_space<vmem>>, vector<8x1xf32>
    %6 = vector.broadcast %5 : vector<8x1xf32> to vector<8x256xf32>
    %7 = arith.addf %4, %6 : vector<8x256xf32>
    %cst_6 = arith.constant 0.000000e+00 : f32
    %8 = vector.broadcast %cst_6 : f32 to vector<8x128xf32>
    %c0_7 = arith.constant 0 : index
    %c0_8 = arith.constant 0 : index
    %9 = vector.load %arg9[%c0_7, %c0_8] : memref<8x512xf32, #tpu.memory_space<vmem>>, vector<8x128xf32>
    tpu.vector_store %arg9[%c0_7, %c0_8], %8 {strides = array<i32>} : memref<8x512xf32, #tpu.memory_space<vmem>>, vector<8x128xf32>,
    %c0_9 = arith.constant 0 : index
    %c384 = arith.constant 384 : index
    %10 = vector.load %arg9[%c0_9, %c384] : memref<8x512xf32, #tpu.memory_space<vmem>>, vector<8x128xf32>
    tpu.vector_store %arg9[%c0_9, %c384], %8 {strides = array<i32>} : memref<8x512xf32, #tpu.memory_space<vmem>>, vector<8x128xf32>,
    %c0_10 = arith.constant 0 : index
    %c128 = arith.constant 128 : index
    %11 = vector.load %arg9[%c0_10, %c128] : memref<8x512xf32, #tpu.memory_space<vmem>>, vector<8x256xf32>
    tpu.vector_store %arg9[%c0_10, %c128], %7 {strides = array<i32>} : memref<8x512xf32, #tpu.memory_space<vmem>>, vector<8x256xf32>,
    %c0_11 = arith.constant 0 : index
    %c111 = arith.constant 111 : index
    %12 = vector.load %arg9[%c0_11, %c111] : memref<8x512xf32, #tpu.memory_space<vmem>>, vector<8x256xf32>
    %c0_12 = arith.constant 0 : index
    %c0_13 = arith.constant 0 : index
    %13 = vector.load %arg5[%c0_12, %c0_13] : memref<8x9xf32, #tpu.memory_space<vmem>>, vector<8x1xf32>
    %14 = vector.broadcast %13 : vector<8x1xf32> to vector<8x256xf32>
    %15 = arith.mulf %12, %14 : vector<8x256xf32>
    %c0_14 = arith.constant 0 : index
    %c127 = arith.constant 127 : index
    %16 = vector.load %arg9[%c0_14, %c127] : memref<8x512xf32, #tpu.memory_space<vmem>>, vector<8x256xf32>
    %c0_15 = arith.constant 0 : index
    %c3 = arith.constant 3 : index
    %17 = vector.load %arg5[%c0_15, %c3] : memref<8x9xf32, #tpu.memory_space<vmem>>, vector<8x1xf32>
    %18 = vector.broadcast %17 : vector<8x1xf32> to vector<8x256xf32>
    %19 = arith.mulf %16, %18 : vector<8x256xf32>
    %20 = arith.addf %15, %19 : vector<8x256xf32>
    %c0_16 = arith.constant 0 : index
    %c143 = arith.constant 143 : index
    %21 = vector.load %arg9[%c0_16, %c143] : memref<8x512xf32, #tpu.memory_space<vmem>>, vector<8x256xf32>
    %c0_17 = arith.constant 0 : index
    %c6 = arith.constant 6 : index
    %22 = vector.load %arg5[%c0_17, %c6] : memref<8x9xf32, #tpu.memory_space<vmem>>, vector<8x1xf32>
    %23 = vector.broadcast %22 : vector<8x1xf32> to vector<8x256xf32>
    %24 = arith.mulf %21, %23 : vector<8x256xf32>
    %25 = arith.addf %20, %24 : vector<8x256xf32>
    %c0_18 = arith.constant 0 : index
    %c0_19 = arith.constant 0 : index
    %c0_20 = arith.constant 0 : index
    %26 = vector.load %arg7[%c0_18, %c0_19, %c0_20] : memref<3x1x256xf32, #tpu.memory_space<vmem>>, vector<1x1x256xf32>
    %27 = vector.shape_cast %26 : vector<1x1x256xf32> to vector<1x256xf32>
    %28 = vector.broadcast %27 : vector<1x256xf32> to vector<8x256xf32>
    %29 = arith.mulf %25, %28 : vector<8x256xf32>
    %c0_21 = arith.constant 0 : index
    %c112 = arith.constant 112 : index
    %30 = vector.load %arg9[%c0_21, %c112] : memref<8x512xf32, #tpu.memory_space<vmem>>, vector<8x256xf32>
    %c0_22 = arith.constant 0 : index
    %c1 = arith.constant 1 : index
    %31 = vector.load %arg5[%c0_22, %c1] : memref<8x9xf32, #tpu.memory_space<vmem>>, vector<8x1xf32>
    %32 = vector.broadcast %31 : vector<8x1xf32> to vector<8x256xf32>
    %33 = arith.mulf %30, %32 : vector<8x256xf32>
    %c0_23 = arith.constant 0 : index
    %c128_24 = arith.constant 128 : index
    %34 = vector.load %arg9[%c0_23, %c128_24] : memref<8x512xf32, #tpu.memory_space<vmem>>, vector<8x256xf32>
    %c0_25 = arith.constant 0 : index
    %c4 = arith.constant 4 : index
    %35 = vector.load %arg5[%c0_25, %c4] : memref<8x9xf32, #tpu.memory_space<vmem>>, vector<8x1xf32>
    %36 = vector.broadcast %35 : vector<8x1xf32> to vector<8x256xf32>
    %37 = arith.mulf %34, %36 : vector<8x256xf32>
    %38 = arith.addf %33, %37 : vector<8x256xf32>
    %c0_26 = arith.constant 0 : index
    %c144 = arith.constant 144 : index
    %39 = vector.load %arg9[%c0_26, %c144] : memref<8x512xf32, #tpu.memory_space<vmem>>, vector<8x256xf32>
    %c0_27 = arith.constant 0 : index
    %c7 = arith.constant 7 : index
    %40 = vector.load %arg5[%c0_27, %c7] : memref<8x9xf32, #tpu.memory_space<vmem>>, vector<8x1xf32>
    %41 = vector.broadcast %40 : vector<8x1xf32> to vector<8x256xf32>
    %42 = arith.mulf %39, %41 : vector<8x256xf32>
    %43 = arith.addf %38, %42 : vector<8x256xf32>
    %44 = arith.addf %29, %43 : vector<8x256xf32>
    %c0_28 = arith.constant 0 : index
    %c113 = arith.constant 113 : index
    %45 = vector.load %arg9[%c0_28, %c113] : memref<8x512xf32, #tpu.memory_space<vmem>>, vector<8x256xf32>
    %c0_29 = arith.constant 0 : index
    %c2 = arith.constant 2 : index
    %46 = vector.load %arg5[%c0_29, %c2] : memref<8x9xf32, #tpu.memory_space<vmem>>, vector<8x1xf32>
    %47 = vector.broadcast %46 : vector<8x1xf32> to vector<8x256xf32>
    %48 = arith.mulf %45, %47 : vector<8x256xf32>
    %c0_30 = arith.constant 0 : index
    %c129 = arith.constant 129 : index
    %49 = vector.load %arg9[%c0_30, %c129] : memref<8x512xf32, #tpu.memory_space<vmem>>, vector<8x256xf32>
    %c0_31 = arith.constant 0 : index
    %c5 = arith.constant 5 : index
    %50 = vector.load %arg5[%c0_31, %c5] : memref<8x9xf32, #tpu.memory_space<vmem>>, vector<8x1xf32>
    %51 = vector.broadcast %50 : vector<8x1xf32> to vector<8x256xf32>
    %52 = arith.mulf %49, %51 : vector<8x256xf32>
    %53 = arith.addf %48, %52 : vector<8x256xf32>
    %c0_32 = arith.constant 0 : index
    %c145 = arith.constant 145 : index
    %54 = vector.load %arg9[%c0_32, %c145] : memref<8x512xf32, #tpu.memory_space<vmem>>, vector<8x256xf32>
    %c0_33 = arith.constant 0 : index
    %c8 = arith.constant 8 : index
    %55 = vector.load %arg5[%c0_33, %c8] : memref<8x9xf32, #tpu.memory_space<vmem>>, vector<8x1xf32>
    %56 = vector.broadcast %55 : vector<8x1xf32> to vector<8x256xf32>
    %57 = arith.mulf %54, %56 : vector<8x256xf32>
    %58 = arith.addf %53, %57 : vector<8x256xf32>
    %c2_34 = arith.constant 2 : index
    %c0_35 = arith.constant 0 : index
    %c0_36 = arith.constant 0 : index
    %59 = vector.load %arg7[%c2_34, %c0_35, %c0_36] : memref<3x1x256xf32, #tpu.memory_space<vmem>>, vector<1x1x256xf32>
    %60 = vector.shape_cast %59 : vector<1x1x256xf32> to vector<1x256xf32>
    %61 = vector.broadcast %60 : vector<1x256xf32> to vector<8x256xf32>
    %62 = arith.mulf %58, %61 : vector<8x256xf32>
    %63 = arith.addf %44, %62 : vector<8x256xf32>
    %c0_37 = arith.constant 0 : index
    %c0_38 = arith.constant 0 : index
    %64 = vector.load %arg6[%c0_37, %c0_38] : memref<8x1xf32, #tpu.memory_space<vmem>>, vector<8x1xf32>
    %65 = vector.broadcast %64 : vector<8x1xf32> to vector<8x256xf32>
    %66 = arith.addf %63, %65 : vector<8x256xf32>
    %cst_39 = arith.constant 0.000000e+00 : f32
    %67 = vector.broadcast %cst_39 : f32 to vector<8x256xf32>
    %68 = arith.maximumf %66, %67 : vector<8x256xf32>
    %c0_40 = arith.constant 0 : index
    %c0_41 = arith.constant 0 : index
    %c0_42 = arith.constant 0 : index
    %69 = vector.load %arg8[%c0_40, %c0_41, %c0_42] : memref<1x8x256xf32, #tpu.memory_space<vmem>>, vector<1x8x256xf32>
    %70 = vector.shape_cast %69 : vector<1x8x256xf32> to vector<8x256xf32>
    %71 = vector.shape_cast %68 : vector<8x256xf32> to vector<1x8x256xf32>
    tpu.vector_store %arg8[%c0_40, %c0_41, %c0_42], %71 {strides = array<i32>} : memref<1x8x256xf32, #tpu.memory_space<vmem>>, vector<1x8x256xf32>,
    return
  }
  func.func @transform_0(%arg0: i32, %arg1: i32) -> (i32, i32, i32) {
    %c0_i32 = arith.constant 0 : i32
    %c0_i32_0 = arith.constant 0 : i32
    %c0_i32_1 = arith.constant 0 : i32
    return %arg0, %c0_i32, %c0_i32_0 : i32, i32, i32
  }
  func.func @transform_1(%arg0: i32, %arg1: i32) -> (i32, i32) {
    %c0_i32 = arith.constant 0 : i32
    %c0_i32_0 = arith.constant 0 : i32
    return %arg1, %c0_i32 : i32, i32
  }
  func.func @transform_2(%arg0: i32, %arg1: i32) -> (i32, i32) {
    %c0_i32 = arith.constant 0 : i32
    %c0_i32_0 = arith.constant 0 : i32
    return %arg1, %c0_i32 : i32, i32
  }
  func.func @transform_3(%arg0: i32, %arg1: i32) -> (i32, i32) {
    %c0_i32 = arith.constant 0 : i32
    %c0_i32_0 = arith.constant 0 : i32
    return %arg1, %c0_i32 : i32, i32
  }
  func.func @transform_4(%arg0: i32, %arg1: i32) -> (i32, i32) {
    %c0_i32 = arith.constant 0 : i32
    %c0_i32_0 = arith.constant 0 : i32
    return %arg1, %c0_i32 : i32, i32
  }
  func.func @transform_5(%arg0: i32, %arg1: i32) -> (i32, i32, i32) {
    %c0_i32 = arith.constant 0 : i32
    %c0_i32_0 = arith.constant 0 : i32
    %c0_i32_1 = arith.constant 0 : i32
    %c0_i32_2 = arith.constant 0 : i32
    return %c0_i32, %c0_i32_0, %c0_i32_1 : i32, i32, i32
  }
  func.func @transform_6(%arg0: i32, %arg1: i32) -> (i32, i32, i32) {
    %c0_i32 = arith.constant 0 : i32
    %c0_i32_0 = arith.constant 0 : i32
    return %arg0, %arg1, %c0_i32 : i32, i32, i32
  }
}

</mosaic_0001>

<llo_original>
// kernel: tpu_custom_call.1
$region0: #{tpu_custom_call.1}
  #allocation0 [shape = 'u32[]', space=smem, size = 0x4, offset = 0x4, fixed_abs, tag = 'smem constant byte address 0x4 - core index']
  #allocation1 [shape = 'u32[72,128]{1,0:T(1,128)}', space=vmem, size = 0x9000, scoped, tag = 'internal scratch']
  #allocation2 [shape = 'f32[8,512]{1,0:T(8,128)}', space=vmem, size = 0x4000, scoped, tag = 'scratch operand']
  %s0 = inlined_call_operand.vmem [shape: f32[2,4,256], index: 0, kind: input, shape index: {}]
  %s1 = inlined_call_operand.vmem [shape: bf16[8,4], index: 1, kind: input, shape index: {}]
  %s2 = inlined_call_operand.vmem [shape: f32[8,1], index: 2, kind: input, shape index: {}]
  %s3 = inlined_call_operand.hbm [shape: f32[8,9], index: 3, kind: input, shape index: {}]
  %s4 = inlined_call_operand.vmem [shape: f32[8,1], index: 4, kind: input, shape index: {}]
  %s5 = inlined_call_operand.vmem [shape: f32[3,1,256], index: 5, kind: input, shape index: {}]
  %s6 = inlined_call_operand.hbm [shape: f32[2,8,256], index: 6, kind: output, shape index: {}]
  %s7 = sld [smem:[#allocation0]]
  $region61: #{tpu_custom_call.1} parent=0
    _
  %s9 = ssub.s32 1, %s7
  %s10 = scalar_select 0, %s9, %s7
  $region1: #{tpu_custom_call.1} parent=0
    #allocation3 [shape = 'u8[4096]{0}', space=vmem, size = 0x1000, scoped, tag = 'input window, operand 3, single buffered']
    #allocation4 [shape = 's32[2]{0}', space=sflag, size = 0x8, scoped, tag = 'scoped memory for tpu_custom_call.1']
    #allocation5 [shape = 's32[2]{0}', space=sflag, size = 0x8, scoped, tag = 'scoped memory for tpu_custom_call.1']
    #allocation6 [shape = 'u8[16384]{0}', space=vmem, size = 0x4000, scoped, tag = 'output window, operand 0']
    %11 = vsyncpa [#allocation4], 0
    %12 = vsyncpa [#allocation5], 0
    %s13 = scalar_lea.sflag [#allocation5], 1
    %14 = vsyncpa %s13, 0
    loop: start=0, step=1, limit=4
    $region2: #{tpu_custom_call.1} parent=1 // loop_pre_header
      _
    $region3: #{tpu_custom_call.1} parent=1 // loop_header
      %s16 = sphi 0, %s20
      %p17 = scmp.ge.s32.totalorder %s16, 4
      %s23 = sphi 0, %s35
      %s24 = sphi 0, %s31
      %s25 = sphi 0, %s23
      %s26 = sphi 0, %s24
      %s27 = sphi 0, %s25
      %s28 = sphi 0, %s26
      %s38 = sphi 0, %s40
      %s41 = sphi 0, %s38
      %s42 = sphi 0, %s41
      %s58 = sphi 0, %s42
      %s64 = sphi 0, %s66
      %s67 = sphi 0, %s64
      %s68 = sphi 0, %s67
      %s84 = sphi 0, %s68
      %s90 = sphi 0, %s92
      %s93 = sphi 0, %s90
      %s94 = sphi 0, %s93
      %s110 = sphi 0, %s94
      %s116 = sphi 0, %s118
      %s119 = sphi 0, %s116
      %s120 = sphi 0, %s119
      %s136 = sphi 0, %s120
      %s142 = sphi 0, %s144
      %s145 = sphi 0, %s142
      %s146 = sphi 0, %s145
      %s162 = sphi 0, %s146
      %s166 = sphi 0, %s166
      %s168 = sphi 0, %s166
      %s169 = sphi 0, %s168
      %s183 = sphi 0, %s169
      %s191 = sphi 0, %s193
      %s194 = sphi 0, %s191
      %s195 = sphi 0, %s194
      %s211 = sphi 0, %s195
    $region4: #{tpu_custom_call.1} parent=1 // loop_header_branch
      %19 = sbr.rel (%p17) target = $region8
    $region5: #{tpu_custom_call.1} parent=1 // loop_body
      %s21 = ssub.s32 %s16, 1
      %s22 = ssub.s32 %s16, 2
      %s29 = sadd.s32 1, %s24
      %p30 = scmp.ge.s32.totalorder %s29, 1
      %s31 = scalar_select %p30, 0, %s29
      %s32 = sadd.s32 1, %s23
      %s33 = scalar_select %p30, %s32, %s23
      %p34 = scmp.ge.s32.totalorder %s33, 2
      %s35 = scalar_select %p34, 0, %s33
      %s36 = ssub.s32 %s23, %s35
      %p37 = scmp.eq.s32.totalorder %s36, 0
      %s39 = sadd.s32 %s38, 1
      %s40 = scalar_select %p37, %s38, %s39
      %p43 = pneg %p37
      %p44 = scmp.eq.s32.totalorder %s16, 1
      %p45 = por %p43, %p44
      %p46 = scmp.ne.s32.totalorder %s38, %s41
      %p47 = scmp.eq.s32.totalorder %s16, 0
      %p48 = por %p46, %p47
      %p49 = scmp.ne.s32.totalorder %s38, %s41
      %p50 = scmp.eq.s32.totalorder %s21, 1
      %p51 = por %p49, %p50
      %p52 = scmp.ne.s32.totalorder %s41, %s42
      %p53 = scmp.eq.s32.totalorder %s21, 0
      %p54 = por %p52, %p53
      %p55 = scmp.ne.s32.totalorder %s41, %s42
      %p56 = scmp.eq.s32.totalorder %s22, 1
      %p57 = por %p55, %p56
      %p59 = scmp.ne.s32.totalorder %s42, %s58
      %p60 = scmp.eq.s32.totalorder %s22, 0
      %p61 = por %p59, %p60
      %s62 = ssub.s32 %s24, %s31
      %p63 = scmp.eq.s32.totalorder %s62, 0
      %s65 = sadd.s32 %s64, 1
      %s66 = scalar_select %p63, %s64, %s65
      %p69 = pneg %p63
      %p70 = scmp.eq.s32.totalorder %s16, 1
      %p71 = por %p69, %p70
      %p72 = scmp.ne.s32.totalorder %s64, %s67
      %p73 = scmp.eq.s32.totalorder %s16, 0
      %p74 = por %p72, %p73
      %p75 = scmp.ne.s32.totalorder %s64, %s67
      %p76 = scmp.eq.s32.totalorder %s21, 1
      %p77 = por %p75, %p76
      %p78 = scmp.ne.s32.totalorder %s67, %s68
      %p79 = scmp.eq.s32.totalorder %s21, 0
      %p80 = por %p78, %p79
      %p81 = scmp.ne.s32.totalorder %s67, %s68
      %p82 = scmp.eq.s32.totalorder %s22, 1
      %p83 = por %p81, %p82
      %p85 = scmp.ne.s32.totalorder %s68, %s84
      %p86 = scmp.eq.s32.totalorder %s22, 0
      %p87 = por %p85, %p86
      %s88 = ssub.s32 %s24, %s31
      %p89 = scmp.eq.s32.totalorder %s88, 0
      %s91 = sadd.s32 %s90, 1
      %s92 = scalar_select %p89, %s90, %s91
      %p95 = pneg %p89
      %p96 = scmp.eq.s32.totalorder %s16, 1
      %p97 = por %p95, %p96
      %p98 = scmp.ne.s32.totalorder %s90, %s93
      %p99 = scmp.eq.s32.totalorder %s16, 0
      %p100 = por %p98, %p99
      %p101 = scmp.ne.s32.totalorder %s90, %s93
      %p102 = scmp.eq.s32.totalorder %s21, 1
      %p103 = por %p101, %p102
      %p104 = scmp.ne.s32.totalorder %s93, %s94
      %p105 = scmp.eq.s32.totalorder %s21, 0
      %p106 = por %p104, %p105
      %p107 = scmp.ne.s32.totalorder %s93, %s94
      %p108 = scmp.eq.s32.totalorder %s22, 1
      %p109 = por %p107, %p108
      %p111 = scmp.ne.s32.totalorder %s94, %s110
      %p112 = scmp.eq.s32.totalorder %s22, 0
      %p113 = por %p111, %p112
      %s114 = ssub.s32 %s24, %s31
      %p115 = scmp.eq.s32.totalorder %s114, 0
      %s117 = sadd.s32 %s116, 1
      %s118 = scalar_select %p115, %s116, %s117
      %p121 = pneg %p115
      %p122 = scmp.eq.s32.totalorder %s16, 1
      %p123 = por %p121, %p122
      %p124 = scmp.ne.s32.totalorder %s116, %s119
      %p125 = scmp.eq.s32.totalorder %s16, 0
      %p126 = por %p124, %p125
      %p127 = scmp.ne.s32.totalorder %s116, %s119
      %p128 = scmp.eq.s32.totalorder %s21, 1
      %p129 = por %p127, %p128
      %p130 = scmp.ne.s32.totalorder %s119, %s120
      %p131 = scmp.eq.s32.totalorder %s21, 0
      %p132 = por %p130, %p131
      %p133 = scmp.ne.s32.totalorder %s119, %s120
      %p134 = scmp.eq.s32.totalorder %s22, 1
      %p135 = por %p133, %p134
      %p137 = scmp.ne.s32.totalorder %s120, %s136
      %p138 = scmp.eq.s32.totalorder %s22, 0
      %p139 = por %p137, %p138
      %s140 = ssub.s32 %s24, %s31
      %p141 = scmp.eq.s32.totalorder %s140, 0
      %s143 = sadd.s32 %s142, 1
      %s144 = scalar_select %p141, %s142, %s143
      %p147 = pneg %p141
      %p148 = scmp.eq.s32.totalorder %s16, 1
      %p149 = por %p147, %p148
      %p150 = scmp.ne.s32.totalorder %s142, %s145
      %p151 = scmp.eq.s32.totalorder %s16, 0
      %p152 = por %p150, %p151
      %p153 = scmp.ne.s32.totalorder %s142, %s145
      %p154 = scmp.eq.s32.totalorder %s21, 1
      %p155 = por %p153, %p154
      %p156 = scmp.ne.s32.totalorder %s145, %s146
      %p157 = scmp.eq.s32.totalorder %s21, 0
      %p158 = por %p156, %p157
      %p159 = scmp.ne.s32.totalorder %s145, %s146
      %p160 = scmp.eq.s32.totalorder %s22, 1
      %p161 = por %p159, %p160
      %p163 = scmp.ne.s32.totalorder %s146, %s162
      %p164 = scmp.eq.s32.totalorder %s22, 0
      %p165 = por %p163, %p164
      %s167 = sadd.s32 %s166, 1
      %p170 = scmp.eq.s32.totalorder %s16, 1
      %p171 = scmp.ne.s32.totalorder %s166, %s168
      %p172 = scmp.eq.s32.totalorder %s16, 0
      %p173 = por %p171, %p172
      %p174 = scmp.ne.s32.totalorder %s166, %s168
      %p175 = scmp.eq.s32.totalorder %s21, 1
      %p176 = por %p174, %p175
      %p177 = scmp.ne.s32.totalorder %s168, %s169
      %p178 = scmp.eq.s32.totalorder %s21, 0
      %p179 = por %p177, %p178
      %p180 = scmp.ne.s32.totalorder %s168, %s169
      %p181 = scmp.eq.s32.totalorder %s22, 1
      %p182 = por %p180, %p181
      %p184 = scmp.ne.s32.totalorder %s169, %s183
      %p185 = scmp.eq.s32.totalorder %s22, 0
      %p186 = por %p184, %p185
      %s187 = ssub.s32 %s23, %s35
      %s188 = ssub.s32 %s24, %s31
      %s189 = sor.u32 %s187, %s188
      %p190 = scmp.eq.s32.totalorder %s189, 0
      %s192 = sadd.s32 %s191, 1
      %s193 = scalar_select %p190, %s191, %s192
      %p196 = pneg %p190
      %p197 = scmp.eq.s32.totalorder %s16, 1
      %p198 = por %p196, %p197
      %p199 = scmp.ne.s32.totalorder %s191, %s194
      %p200 = scmp.eq.s32.totalorder %s16, 0
      %p201 = por %p199, %p200
      %p202 = scmp.ne.s32.totalorder %s191, %s194
      %p203 = scmp.eq.s32.totalorder %s21, 1
      %p204 = por %p202, %p203
      %p205 = scmp.ne.s32.totalorder %s194, %s195
      %p206 = scmp.eq.s32.totalorder %s21, 0
      %p207 = por %p205, %p206
      %p208 = scmp.ne.s32.totalorder %s194, %s195
      %p209 = scmp.eq.s32.totalorder %s22, 1
      %p210 = por %p208, %p209
      %p212 = scmp.ne.s32.totalorder %s195, %s211
      %p213 = scmp.eq.s32.totalorder %s22, 0
      %p214 = por %p212, %p213
      %p215 = scmp.le.s32.totalorder 1, %s16
      %p216 = scmp.lt.s32.totalorder %s16, 3
      %p217 = pnand %p215, %p216
      %p218 = pneg %p217
      // Predicated region
      $region9: #{tpu_custom_call.1} parent=5 // pred_check
        _
      $region10: #{tpu_custom_call.1} parent=5 // pred_check_branch
        %220 = sbr.rel (%p217) target = $region12
      $region11: #{tpu_custom_call.1} parent=5 // pred_region
        %s221 = ssub.s32 %s16, 1
        // Predicated region
        $region13: #{tpu_custom_call.1} parent=11 // pred_check
          %p222 = pneg %p80
        $region14: #{tpu_custom_call.1} parent=11 // pred_check_branch
          %224 = sbr.rel (%p222) target = $region16
        $region15: #{tpu_custom_call.1} parent=11 // pred_region
          %p225 = scmp.lt.s32.totalorder %s26, 0
          %s226 = scalar_select %p225, %s26, 0
          %s227 = smul.addr %s226, 4
          %s228 = scalar_lea.vmem %s1, %s227
        $region16: #{tpu_custom_call.1} parent=11 // pred_fallthru
          _
        // Predicated region
        $region17: #{tpu_custom_call.1} parent=11 // pred_check
          %p229 = pneg %p106
        $region18: #{tpu_custom_call.1} parent=11 // pred_check_branch
          %231 = sbr.rel (%p229) target = $region20
        $region19: #{tpu_custom_call.1} parent=11 // pred_region
          %p232 = scmp.lt.s32.totalorder %s26, 0
          %s233 = scalar_select %p232, %s26, 0
          %s234 = smul.addr %s233, 8
          %s235 = scalar_lea.vmem %s2, %s234
        $region20: #{tpu_custom_call.1} parent=11 // pred_fallthru
          _
        // Predicated region
        $region21: #{tpu_custom_call.1} parent=11 // pred_check
          %p236 = pneg %p132
        $region22: #{tpu_custom_call.1} parent=11 // pred_check_branch
          %238 = sbr.rel (%p236) target = $region24
        $region23: #{tpu_custom_call.1} parent=11 // pred_region
          %240 = vsyncadd [#allocation4], 0
          %s241 = smul.addr %s26, 8
          %s242 = scalar_lea.hbm %s3, %s241
          %s244 = sshll.u32 %s242, 4
          %s245 = int_to_ptr.hbm [resolvable:$true] %s244
          %s246 = sshll.u32 [#allocation3], 4
          %s247 = int_to_ptr.vmem [resolvable:$true] %s246
          %249 = dma.hbm_to_vmem [thread:$0]  %s245, 128, %s247, [#allocation4]
        $region24: #{tpu_custom_call.1} parent=11 // pred_fallthru
          _
        // Predicated region
        $region25: #{tpu_custom_call.1} parent=11 // pred_check
          %p250 = pneg %p158
        $region26: #{tpu_custom_call.1} parent=11 // pred_check_branch
          %252 = sbr.rel (%p250) target = $region28
        $region27: #{tpu_custom_call.1} parent=11 // pred_region
          %p253 = scmp.lt.s32.totalorder %s26, 0
          %s254 = scalar_select %p253, %s26, 0
          %s255 = smul.addr %s254, 8
          %s256 = scalar_lea.vmem %s4, %s255
        $region28: #{tpu_custom_call.1} parent=11 // pred_fallthru
          _
        // Predicated region
        $region29: #{tpu_custom_call.1} parent=11 // pred_check
          %p257 = pneg %p179
        $region30: #{tpu_custom_call.1} parent=11 // pred_check_branch
          %259 = sbr.rel (%p257) target = $region32
        $region31: #{tpu_custom_call.1} parent=11 // pred_region
          _
        $region32: #{tpu_custom_call.1} parent=11 // pred_fallthru
          _
      $region12: #{tpu_custom_call.1} parent=5 // pred_fallthru
        _
      %p260 = scmp.lt.s32.totalorder %s16, 2
      // Predicated region
      $region33: #{tpu_custom_call.1} parent=5 // pred_check
        %p261 = pneg %p260
      $region34: #{tpu_custom_call.1} parent=5 // pred_check_branch
        %263 = sbr.rel (%p261) target = $region36
      $region35: #{tpu_custom_call.1} parent=5 // pred_region
        // Predicated region
        $region37: #{tpu_custom_call.1} parent=35 // pred_check
          %p264 = pneg %p48
        $region38: #{tpu_custom_call.1} parent=35 // pred_check_branch
          %266 = sbr.rel (%p264) target = $region40
        $region39: #{tpu_custom_call.1} parent=35 // pred_region
          %p267 = scmp.lt.s32.totalorder %s23, 1
          %s268 = scalar_select %p267, %s23, 1
          %s269 = smul.addr %s268, 2
          %s270 = smul.addr %s269, 4
          %s271 = scalar_lea.vmem %s0, %s270
        $region40: #{tpu_custom_call.1} parent=35 // pred_fallthru
          _
      $region36: #{tpu_custom_call.1} parent=5 // pred_fallthru
        _
      %p272 = scmp.le.s32.totalorder 1, %s16
      %p273 = scmp.lt.s32.totalorder %s16, 3
      %p274 = pnand %p272, %p273
      %p275 = pneg %p274
      // Predicated region
      $region41: #{tpu_custom_call.1} parent=5 // pred_check
        _
      $region42: #{tpu_custom_call.1} parent=5 // pred_check_branch
        %277 = sbr.rel (%p274) target = $region44
      $region43: #{tpu_custom_call.1} parent=5 // pred_region
        %s278 = ssub.s32 %s16, 1
        // Predicated region
        $region45: #{tpu_custom_call.1} parent=43 // pred_check
          %p279 = pneg %p132
        $region46: #{tpu_custom_call.1} parent=43 // pred_check_branch
          %281 = sbr.rel (%p279) target = $region48
        $region47: #{tpu_custom_call.1} parent=43 // pred_region
          %283 = dma.done [#allocation4], 128
        $region48: #{tpu_custom_call.1} parent=43 // pred_fallthru
          _
        %p284 = scmp.lt.s32.totalorder %s25, 1
        %s285 = scalar_select %p284, %s25, 1
        %s286 = smul.addr %s285, 2
        %s287 = smul.addr %s286, 4
        %s288 = scalar_lea.vmem %s0, %s287
        %p289 = pneg %p54
        %p290 = pneg %p51
        %p291 = scmp.lt.s32.totalorder %s26, 0
        %s292 = scalar_select %p291, %s26, 0
        %s293 = smul.addr %s292, 4
        %s294 = scalar_lea.vmem %s1, %s293
        %p295 = pneg %p80
        %p296 = pneg %p77
        %p297 = scmp.lt.s32.totalorder %s26, 0
        %s298 = scalar_select %p297, %s26, 0
        %s299 = smul.addr %s298, 8
        %s300 = scalar_lea.vmem %s2, %s299
        %p301 = pneg %p106
        %p302 = pneg %p103
        %p303 = pneg %p132
        %p304 = pneg %p129
        %p305 = scmp.lt.s32.totalorder %s26, 0
        %s306 = scalar_select %p305, %s26, 0
        %s307 = smul.addr %s306, 8
        %s308 = scalar_lea.vmem %s4, %s307
        %p309 = pneg %p158
        %p310 = pneg %p155
        %p311 = pneg %p179
        %p312 = pneg %p176
        %p313 = pneg %p207
        %p314 = pneg %p204
        %s315 = sand.u32 %s194, 1
        %s316 = scalar_lea.sflag [#allocation5], %s315
        %s317 = sand.u32 %s194, 1
        %s318 = smul.addr %s317, 16
        %s319 = scalar_lea.vmem [#allocation6], %s318
        %p320 = scmp.lt.s32.totalorder %s25, 1
        %s321 = scalar_select %p320, %s25, 1
        %s322 = smul.addr %s321, 2
        %s323 = smul.addr %s322, 4
        %s324 = scalar_lea.vmem %s0, %s323
        %p325 = scmp.lt.s32.totalorder %s26, 0
        %s326 = scalar_select %p325, %s26, 0
        %s327 = smul.addr %s326, 4
        %s328 = scalar_lea.vmem %s1, %s327
        %p329 = scmp.lt.s32.totalorder %s26, 0
        %s330 = scalar_select %p329, %s26, 0
        %s331 = smul.addr %s330, 8
        %s332 = scalar_lea.vmem %s2, %s331
        %p333 = scmp.lt.s32.totalorder %s26, 0
        %s334 = scalar_select %p333, %s26, 0
        %s335 = smul.addr %s334, 8
        %s336 = scalar_lea.vmem %s4, %s335
        %v338 = vld [vmem:[%s324] sm:$0xff]
        %340 = vst [vmem:[#allocation1] ss:$2 sm:$0xff] %v338
        %v341 = vld.sshfl [vmem:[#allocation1] sm:$0xff pattern:$0x75316420]
        %v342 = vld.sshfl [vmem:[#allocation1 + $0x8] sm:$0xff pattern:$0x75316420]
        %v345 = vpack.c.bf16 %v341, %v341
        %v346 = vpack.c.bf16 %v342, %v342
        %v347 = vld [vmem:[%s328] sm:$0xf]
        %v348 = vld [vmem:[%s332] sm:$0xff]
        %350 = vset.pattern.permute.xlu0 0
        %351 = vperm.xlu0 %350, %v348
        %v352 = vpop.permute.xlu0 %351
        %vm354 = vcmask 31744
        %v356 = vsel %vm354, %v347, 0
        %vm358 = vcmask 1041408
        %v360 = vsel %vm358, %v345, 0
        %v363 = vsel %vm358, %v346, 0
        %365 = vmatpush.bf16.msra.mxu0 0
        %366 = vmatpush.bf16.msra.mxu0 0
        %367 = vmatpush.bf16.msra.mxu0 0
        %368 = vmatpush.bf16.msra.mxu0 0
        %369 = vmatpush.bf16.msra.mxu0 0
        %370 = vmatpush.bf16.msra.mxu0 0
        %371 = vmatpush.bf16.msra.mxu0 0
        %372 = vmatpush.bf16.msra.mxu0 %v360
        %373 = vmatmul.bf16.gmra.mxu0 %v356
        %v374 = vpop.f32.mrf.mxu0
        %v375 = vadd.f32 %v352, %v374
        %v376 = vpop.f32.mrf.mxu0
        %377 = vdwg.mxu0
        %378 = vmatpush.bf16.msra.mxu0 0
        %379 = vmatpush.bf16.msra.mxu0 0
        %380 = vmatpush.bf16.msra.mxu0 0
        %381 = vmatpush.bf16.msra.mxu0 0
        %382 = vmatpush.bf16.msra.mxu0 0
        %383 = vmatpush.bf16.msra.mxu0 0
        %384 = vmatpush.bf16.msra.mxu0 0
        %385 = vmatpush.bf16.msra.mxu0 %v363
        %386 = vmatmul.bf16.gmra.mxu0 %v356
        %v387 = vpop.f32.mrf.mxu0
        %v388 = vadd.f32 %v352, %v387
        %v389 = vpop.f32.mrf.mxu0
        %390 = vdwg.mxu0
        %391 = vst [vmem:[#allocation2] sm:$0xff] 0.0
        %392 = vst [vmem:[#allocation2 + $0x18] sm:$0xff] 0.0
        %393 = vst [vmem:[#allocation2 + $0x8] sm:$0xff] %v375
        %394 = vst [vmem:[#allocation2 + $0x10] sm:$0xff] %v388
        %v395 = vld [vmem:[#allocation2] sm:$0xff]
        %v396 = vld [vmem:[#allocation2 + $0x8] sm:$0xff]
        %v397 = vld [vmem:[#allocation2 + $0x10] sm:$0xff]
        %v398 = vld [vmem:[#allocation3] sm:$0xff]
        %400 = vset.pattern.permute.xlu0 0
        %401 = vperm.xlu0 %400, %v398
        %v402 = vpop.permute.xlu0 %401
        %v404 = vmul.f32 %v395, %v402
        %v405 = vmul.f32 %v396, %v402
        %v406 = vmul.f32 %v397, %v402
        %407 = vset.pattern.permute.xlu0 3
        %408 = vperm.xlu0 %407, %v398
        %v409 = vpop.permute.xlu0 %408
        %v411 = vmul.f32 %v395, %v409
        %v412 = vmul.f32 %v396, %v409
        %v413 = vmul.f32 %v397, %v409
        %417 = vrot.lane.b32.xlu0 %v411, 112
        %v418 = vpop.permute.xlu0 %417
        %419 = vrot.lane.b32.xlu0 %v412, 112
        %v420 = vpop.permute.xlu0 %419
        %421 = vrot.lane.b32.xlu0 %v413, 112
        %v422 = vpop.permute.xlu0 %421
        %vm423 = vcmask 916480
        %v424 = vsel %vm423, %v418, %v420
        %v425 = vsel %vm423, %v420, %v422
        %v429 = vadd.f32 %v404, %v424
        %v430 = vadd.f32 %v405, %v425
        %v431 = vadd.f32 %v406, %v422
        %v432 = vld [vmem:[#allocation2 + $0x8] sm:$0xff]
        %v433 = vld [vmem:[#allocation2 + $0x10] sm:$0xff]
        %v434 = vld [vmem:[#allocation2 + $0x18] sm:$0xff]
        %435 = vset.pattern.permute.xlu0 6
        %436 = vperm.xlu0 %435, %v398
        %v437 = vpop.permute.xlu0 %436
        %v439 = vmul.f32 %v432, %v437
        %v440 = vmul.f32 %v433, %v437
        %v441 = vmul.f32 %v434, %v437
        %445 = vrot.lane.b32.xlu0 %v439, 96
        %v446 = vpop.permute.xlu0 %445
        %447 = vrot.lane.b32.xlu0 %v440, 96
        %v448 = vpop.permute.xlu0 %447
        %449 = vrot.lane.b32.xlu0 %v441, 96
        %v450 = vpop.permute.xlu0 %449
        %vm451 = vcmask 785408
        %v452 = vsel %vm451, %v446, %v448
        %v453 = vsel %vm451, %v448, %v450
        %v457 = vadd.f32 %v429, %v446
        %v458 = vadd.f32 %v430, %v452
        %v459 = vadd.f32 %v431, %v453
        %v460 = vld [vmem:[%s5] sm:$0x3]
        %v462 = vperm.slane %v460, 0
        %v463 = vperm.slane %v460, 1
        %464 = vrot.lane.b32.xlu0 %v462, 111
        %v465 = vpop.permute.xlu0 %464
        %466 = vrot.lane.b32.xlu0 %v463, 111
        %v467 = vpop.permute.xlu0 %466
        %vm468 = vcmask 908288
        %v469 = vsel %vm468, %v465, %v467
        %v473 = vmul.f32 %v457, %v465
        %v474 = vmul.f32 %v458, %v469
        %v475 = vmul.f32 %v459, %v467
        %476 = vset.pattern.permute.xlu0 1
        %477 = vperm.xlu0 %476, %v398
        %v478 = vpop.permute.xlu0 %477
        %v480 = vmul.f32 %v395, %v478
        %v481 = vmul.f32 %v396, %v478
        %v482 = vmul.f32 %v397, %v478
        %483 = vset.pattern.permute.xlu0 4
        %484 = vperm.xlu0 %483, %v398
        %v485 = vpop.permute.xlu0 %484
        %v487 = vmul.f32 %v396, %v485
        %v488 = vmul.f32 %v397, %v485
        %491 = vrot.lane.b32.xlu0 %v487, 112
        %v492 = vpop.permute.xlu0 %491
        %493 = vrot.lane.b32.xlu0 %v488, 112
        %v494 = vpop.permute.xlu0 %493
        %v495 = vsel %vm423, %v492, %v494
        %v499 = vadd.f32 %v480, %v492
        %v500 = vadd.f32 %v481, %v495
        %v501 = vadd.f32 %v482, %v494
        %502 = vset.pattern.permute.xlu0 7
        %503 = vperm.xlu0 %502, %v398
        %v504 = vpop.permute.xlu0 %503
        %v506 = vmul.f32 %v432, %v504
        %v507 = vmul.f32 %v433, %v504
        %v508 = vmul.f32 %v434, %v504
        %512 = vrot.lane.b32.xlu0 %v506, 96
        %v513 = vpop.permute.xlu0 %512
        %514 = vrot.lane.b32.xlu0 %v507, 96
        %v515 = vpop.permute.xlu0 %514
        %516 = vrot.lane.b32.xlu0 %v508, 96
        %v517 = vpop.permute.xlu0 %516
        %v518 = vsel %vm451, %v513, %v515
        %v519 = vsel %vm451, %v515, %v517
        %v523 = vadd.f32 %v499, %v513
        %v524 = vadd.f32 %v500, %v518
        %v525 = vadd.f32 %v501, %v519
        %529 = vrot.lane.b32.xlu0 %v523, 127
        %v530 = vpop.permute.xlu0 %529
        %531 = vrot.lane.b32.xlu0 %v524, 127
        %v532 = vpop.permute.xlu0 %531
        %533 = vrot.lane.b32.xlu0 %v525, 127
        %v534 = vpop.permute.xlu0 %533
        %vm535 = vcmask 1039360
        %v536 = vsel %vm535, %v530, %v532
        %v537 = vsel %vm535, %v532, %v534
        %v541 = vadd.f32 %v473, %v536
        %v542 = vadd.f32 %v474, %v537
        %v543 = vadd.f32 %v475, %v534
        %544 = vset.pattern.permute.xlu0 2
        %545 = vperm.xlu0 %544, %v398
        %v546 = vpop.permute.xlu0 %545
        %v548 = vmul.f32 %v395, %v546
        %v549 = vmul.f32 %v396, %v546
        %v550 = vmul.f32 %v397, %v546
        %551 = vset.pattern.permute.xlu0 5
        %552 = vperm.xlu0 %551, %v398
        %v553 = vpop.permute.xlu0 %552
        %v555 = vmul.f32 %v432, %v553
        %v556 = vmul.f32 %v433, %v553
        %v557 = vmul.f32 %v434, %v553
        %561 = vrot.lane.b32.xlu0 %v555, 112
        %v562 = vpop.permute.xlu0 %561
        %563 = vrot.lane.b32.xlu0 %v556, 112
        %v564 = vpop.permute.xlu0 %563
        %565 = vrot.lane.b32.xlu0 %v557, 112
        %v566 = vpop.permute.xlu0 %565
        %v567 = vsel %vm423, %v562, %v564
        %v568 = vsel %vm423, %v564, %v566
        %v572 = vadd.f32 %v548, %v562
        %v573 = vadd.f32 %v549, %v567
        %v574 = vadd.f32 %v550, %v568
        %575 = vset.pattern.permute.xlu0 8
        %576 = vperm.xlu0 %575, %v398
        %v577 = vpop.permute.xlu0 %576
        %v579 = vmul.f32 %v432, %v577
        %v580 = vmul.f32 %v433, %v577
        %v581 = vmul.f32 %v434, %v577
        %585 = vrot.lane.b32.xlu0 %v579, 96
        %v586 = vpop.permute.xlu0 %585
        %587 = vrot.lane.b32.xlu0 %v580, 96
        %v588 = vpop.permute.xlu0 %587
        %589 = vrot.lane.b32.xlu0 %v581, 96
        %v590 = vpop.permute.xlu0 %589
        %v591 = vsel %vm451, %v586, %v588
        %v592 = vsel %vm451, %v588, %v590
        %v596 = vadd.f32 %v572, %v586
        %v597 = vadd.f32 %v573, %v591
        %v598 = vadd.f32 %v574, %v592
        %s599 = scalar_lea.vmem %s5, 4
        %v600 = vld [vmem:[%s599] sm:$0x3]
        %v602 = vperm.slane %v600, 0
        %v603 = vperm.slane %v600, 1
        %604 = vrot.lane.b32.xlu0 %v602, 113
        %v605 = vpop.permute.xlu0 %604
        %606 = vrot.lane.b32.xlu0 %v603, 113
        %v607 = vpop.permute.xlu0 %606
        %vm608 = vcmask 924672
        %v609 = vsel %vm608, %v605, %v607
        %v613 = vmul.f32 %v596, %v605
        %v614 = vmul.f32 %v597, %v609
        %v615 = vmul.f32 %v598, %v607
        %619 = vrot.lane.b32.xlu0 %v613, 126
        %v620 = vpop.permute.xlu0 %619
        %621 = vrot.lane.b32.xlu0 %v614, 126
        %v622 = vpop.permute.xlu0 %621
        %623 = vrot.lane.b32.xlu0 %v615, 126
        %v624 = vpop.permute.xlu0 %623
        %vm625 = vcmask 1031168
        %v626 = vsel %vm625, %v620, %v622
        %v627 = vsel %vm625, %v622, %v624
        %v631 = vadd.f32 %v541, %v626
        %v632 = vadd.f32 %v542, %v627
        %v633 = vadd.f32 %v543, %v624
        %v634 = vld [vmem:[%s336] sm:$0xff]
        %636 = vset.pattern.permute.xlu0 0
        %637 = vperm.xlu0 %636, %v634
        %v638 = vpop.permute.xlu0 %637
        %v640 = vadd.f32 %v631, %v638
        %v641 = vadd.f32 %v632, %v638
        %v642 = vadd.f32 %v633, %v638
        %v643 = vmax.f32 %v640, 0.0
        %v644 = vmax.f32 %v641, 0.0
        %v645 = vmax.f32 %v642, 0.0
        %649 = vrot.lane.b32.xlu0 %v643, 17
        %v650 = vpop.permute.xlu0 %649
        %651 = vrot.lane.b32.xlu0 %v644, 17
        %v652 = vpop.permute.xlu0 %651
        %653 = vrot.lane.b32.xlu0 %v645, 17
        %v654 = vpop.permute.xlu0 %653
        %vm655 = vcmask 138240
        %v656 = vsel %vm655, %v650, %v652
        %v657 = vsel %vm655, %v652, %v654
        %660 = vst [vmem:[%s319] sm:$0xff] %v656
        %661 = vst [vmem:[%s319 + $0x8] sm:$0xff] %v657
        %s662 = sand.u32 %s194, 1
        %s663 = scalar_lea.sflag [#allocation5], %s662
        %s664 = sand.u32 %s194, 1
        %s665 = smul.addr %s664, 16
        %s666 = scalar_lea.vmem [#allocation6], %s665
        // Predicated region
        $region49: #{tpu_custom_call.1} parent=43 // pred_check
          %p667 = pneg %p204
        $region50: #{tpu_custom_call.1} parent=43 // pred_check_branch
          %669 = sbr.rel (%p667) target = $region52
        $region51: #{tpu_custom_call.1} parent=43 // pred_region
          %671 = vsyncadd %s663, 0
          %s672 = smul.addr %s26, 2
          %s673 = smul.addr %s25, 2
          %s674 = sadd.s32 %s672, %s673
          %s675 = smul.addr %s674, 8
          %s676 = scalar_lea.hbm %s6, %s675
          %s678 = sshll.u32 %s666, 4
          %s679 = int_to_ptr.vmem [resolvable:$true] %s678
          %s680 = sshll.u32 %s676, 4
          %s681 = int_to_ptr.hbm [resolvable:$true] %s680
          %683 = dma.vmem_to_hbm [thread:$0]  %s679, 256, %s681, %s663
        $region52: #{tpu_custom_call.1} parent=43 // pred_fallthru
          _
      $region44: #{tpu_custom_call.1} parent=5 // pred_fallthru
        _
      %p684 = scmp.le.s32.totalorder 2, %s16
      // Predicated region
      $region53: #{tpu_custom_call.1} parent=5 // pred_check
        %p685 = pneg %p684
      $region54: #{tpu_custom_call.1} parent=5 // pred_check_branch
        %687 = sbr.rel (%p685) target = $region56
      $region55: #{tpu_custom_call.1} parent=5 // pred_region
        %s688 = ssub.s32 %s16, 2
        // Predicated region
        $region57: #{tpu_custom_call.1} parent=55 // pred_check
          %p689 = pneg %p210
        $region58: #{tpu_custom_call.1} parent=55 // pred_check_branch
          %691 = sbr.rel (%p689) target = $region60
        $region59: #{tpu_custom_call.1} parent=55 // pred_region
          %s692 = sand.u32 %s195, 1
          %s693 = scalar_lea.sflag [#allocation5], %s692
          %s694 = sand.u32 %s195, 1
          %s695 = smul.addr %s694, 16
          %s696 = scalar_lea.vmem [#allocation6], %s695
          %698 = dma.done %s693, 256
        $region60: #{tpu_custom_call.1} parent=55 // pred_fallthru
          _
      $region56: #{tpu_custom_call.1} parent=5 // pred_fallthru
        _
    $region6: #{tpu_custom_call.1} parent=1 // loop_footer
      %s20 = sadd.s32 1, %s16
    $region7: #{tpu_custom_call.1} parent=1 // loop_footer_branch
      %15 = sbr.rel target = $region3
    $region8: #{tpu_custom_call.1} parent=1 // loop_exit
      _
    %699 = vsyncpa [#allocation4], 1
    %s700 = scalar_lea.sflag [#allocation4], 1
    %701 = vsyncpa %s700, 1
    %702 = vsyncpa [#allocation5], 1
    %s703 = scalar_lea.sflag [#allocation5], 1
    %704 = vsyncpa %s703, 1

</llo_original>
